<compile_context>
chip_gen: v7x
topology: tpu7x:2x2x1
jax: 0.10.0
libtpu: 0.0.40
codegen_flags: <defaults>
</compile_context>

<pallas_src>
import functools

import jax
import jax.numpy as jnp
from jax import lax
from jax.experimental import pallas as pl
from jax.experimental.pallas import tpu as pltpu


# ---------------------------------------------------------------------------
# Fused Pallas kernel: Block stack + mean-over-L + linear head.
# One batch element per grid step; activations never leave the core.
# ---------------------------------------------------------------------------
def _cdil_fused_kernel(*refs, ks, layer_meta):
    """refs = (x_ref,
               w_aug_0, b_aug_0, ..., w_aug_{n-1}, b_aug_{n-1},
               w_lin_ref, b_lin_ref,
               y_ref)

    x_ref   : (C_in0, L)        one batch element, f32
    w_aug_i : (R_i, ks*C_in_i)  conv taps flattened into the contraction dim;
                                when the layer has a 1x1 residual conv, its
                                weights are stacked as extra output rows
                                (R_i = 2*C_out_i), non-zero only against the
                                centre (shift-0) tap block.
    b_aug_i : (R_i, 1)          f32 bias (conv bias [+ residual bias])
    w_lin   : (OUT, C_last)     f32 classification head weight
    b_lin   : (OUT, 1)          f32 classification head bias
    y_ref   : (OUT, 1)          f32 fused head output for this batch element
    """
    n_layers = len(layer_meta)
    x_ref = refs[0]
    y_ref = refs[-1]
    wlin_ref = refs[1 + 2 * n_layers]
    blin_ref = refs[2 + 2 * n_layers]

    L = x_ref.shape[-1]
    x_f = x_ref[...].astype(jnp.float32)            # resident activation, f32

    for li, (c_in, c_out, dil, pad, has_res) in enumerate(layer_meta):
        w_ref = refs[1 + 2 * li]
        b_ref = refs[2 + 2 * li]

        # Circular dilated conv:
        #   out[:, i] = sum_t W_t @ x[:, (i - pad + t*dil) mod L]
        # Each tap is a static lane rotation (XLU slot, no padded HBM copy);
        # taps are stacked on the sublane axis so the whole layer (conv +
        # folded 1x1 residual conv) is ONE MXU matmul, contraction ks*C_in.
        taps = []
        for t in range(ks):                          # static unroll (ks small)
            s = (pad - t * dil) % L
            taps.append(x_f if s == 0 else pltpu.roll(x_f, shift=s, axis=1))
        xstack = taps[0] if ks == 1 else jnp.concatenate(taps, axis=0)
        xstack = xstack.astype(w_ref.dtype)          # bf16 (or f32) MXU operand

        z = jnp.dot(w_ref[...], xstack, preferred_element_type=jnp.float32)
        z = z + b_ref[...]                           # f32 epilogue
        if has_res:
            # rows [:c_out] = conv path, rows [c_out:] = 1x1 residual conv.
            x_f = jnp.maximum(z[:c_out, :], 0.0) + z[c_out:, :]
        else:
            x_f = jnp.maximum(z, 0.0) + x_f          # identity residual, f32

    # Fused head: mean_L(W_lin @ x) == W_lin @ mean_L(x)  (linearity).
    h = jnp.dot(wlin_ref[...], x_f, preferred_element_type=jnp.float32)
    y = jnp.mean(h, axis=-1, keepdims=True) + blin_ref[...]
    y_ref[...] = y.astype(y_ref.dtype)


# ---------------------------------------------------------------------------
# One-time parameter preparation (hoisted out of the forward pass).
# ---------------------------------------------------------------------------
def prepare_conv_params(params, *, ks, compute_dtype=jnp.bfloat16):
    """Flatten taps, fold the 1x1 residual conv into the weight slab, cast."""
    layers = []
    meta = []
    for i, layer in enumerate(params["blocks"]):
        dil = 2 ** i
        pad = dil * (ks - 1) // 2
        w = layer["w"]                                   # (C_out, C_in, ks)
        c_out, c_in, _ = w.shape
        # w_flat[o, t*C_in + c] = w[o, c, t]
        w_flat = jnp.transpose(w, (0, 2, 1)).reshape(c_out, ks * c_in)
        b = layer["b"].reshape(c_out, 1)

        has_res = layer.get("w_res") is not None
        if has_res:
            shifts = [pad - t * dil for t in range(ks)]
            assert 0 in shifts, "residual fold needs a zero-shift (centre) tap"
            t_c = shifts.index(0)
            w_res_aug = jnp.zeros((c_out, ks * c_in), w.dtype)
            w_res_aug = w_res_aug.at[:, t_c * c_in:(t_c + 1) * c_in].set(layer["w_res"])
            w_aug = jnp.concatenate([w_flat, w_res_aug], axis=0)
            b_aug = jnp.concatenate([b, layer["b_res"].reshape(c_out, 1)], axis=0)
        else:
            w_aug, b_aug = w_flat, b

        layers.append((w_aug.astype(compute_dtype), b_aug.astype(jnp.float32)))
        meta.append((c_in, c_out, dil, pad, has_res))

    w_lin, b_lin = params["linear"]
    head = (w_lin.astype(jnp.float32), b_lin.reshape(-1, 1).astype(jnp.float32))
    return layers, head, tuple(meta)


# ---------------------------------------------------------------------------
# Fused forward wrapper.
# ---------------------------------------------------------------------------
def cdil_forward_fused(x_nlc, layers, head, meta, *, ks):
    """x_nlc: (N, L, input_size) -> (N, output_size)."""
    x = jnp.transpose(x_nlc, (0, 2, 1)).astype(jnp.float32)   # permute(0,2,1)
    N, c_in0, L = x.shape
    w_lin, b_lin = head
    out_dim, c_last = w_lin.shape
    assert c_last == meta[-1][1]
    assert all(pad <= L for (_, _, _, pad, _) in meta), \
        "reference single-wrap circular pad requires pad <= L"

    in_specs = [pl.BlockSpec((None, c_in0, L), lambda n: (n, 0, 0))]
    args = [x]
    for (w_aug, b_aug) in layers:
        in_specs.append(pl.BlockSpec(w_aug.shape, lambda n: (0, 0)))
        in_specs.append(pl.BlockSpec(b_aug.shape, lambda n: (0, 0)))
        args += [w_aug, b_aug]
    in_specs.append(pl.BlockSpec(w_lin.shape, lambda n: (0, 0)))
    in_specs.append(pl.BlockSpec(b_lin.shape, lambda n: (0, 0)))
    args += [w_lin, b_lin]

    flops = 0
    for (w_aug, _) in layers:
        flops += 2 * N * int(w_aug.shape[0]) * int(w_aug.shape[1]) * L
    flops += 2 * N * out_dim * c_last * L
    bytes_accessed = int(x.size) * 4 + N * out_dim * 4
    bytes_accessed += sum(int(w.size) * w.dtype.itemsize + int(b.size) * 4
                          for (w, b) in layers)
    bytes_accessed += int(w_lin.size) * 4 + int(b_lin.size) * 4

    kernel = functools.partial(_cdil_fused_kernel, ks=ks, layer_meta=meta)
    y3 = pl.pallas_call(
        kernel,
        out_shape=jax.ShapeDtypeStruct((N, out_dim, 1), jnp.float32),
        grid=(N,),
        in_specs=in_specs,
        out_specs=pl.BlockSpec((None, out_dim, 1), lambda n: (n, 0, 0)),
        compiler_params=pltpu.CompilerParams(
            dimension_semantics=("parallel",)),          # both TCs on v7x
        cost_estimate=pl.CostEstimate(flops=int(flops), transcendentals=0,
                                      bytes_accessed=int(bytes_accessed)),
    )(*args)
    return y3[:, :, 0]


def make_forward(params, *, ks, compute_dtype):
    layers, head, meta = prepare_conv_params(params, ks=ks,
                                             compute_dtype=compute_dtype)

    @jax.jit
    def fwd(x_nlc):
        return cdil_forward_fused(x_nlc, layers, head, meta, ks=ks)
    return fwd


# ---------------------------------------------------------------------------
# Synthetic parameters mirroring the PyTorch module's shapes.
# ---------------------------------------------------------------------------
def init_params(key, input_size, hidden_channels, output_size, ks):
    blocks = []
    c_prev = input_size
    keys = jax.random.split(key, len(hidden_channels) + 1)
    for i, c_out in enumerate(hidden_channels):
        k1, k2, k3, k4 = jax.random.split(keys[i], 4)
        # weight_norm(Conv1d): effective weight = g * v / ||v|| per out-channel.
        v = jax.random.normal(k1, (c_out, c_prev, ks), jnp.float32) / jnp.sqrt(c_prev * ks)
        norm = jnp.sqrt(jnp.sum(v * v, axis=(1, 2), keepdims=True)) + 1e-12
        g = jnp.sqrt(jnp.sum(v * v, axis=(1, 2), keepdims=True))
        w = g * v / norm
        layer = {"w": w, "b": 0.1 * jax.random.normal(k2, (c_out,), jnp.float32)}
        if c_prev != c_out:   # 1x1 residual conv only when channel counts differ
            layer["w_res"] = jax.random.normal(k3, (c_out, c_prev), jnp.float32) / jnp.sqrt(c_prev)
            layer["b_res"] = 0.1 * jax.random.normal(k4, (c_out,), jnp.float32)
        blocks.append(layer)
        c_prev = c_out
    k5, k6 = jax.random.split(keys[-1])
    w_lin = jax.random.normal(k5, (output_size, c_prev), jnp.float32) / jnp.sqrt(c_prev)
    b_lin = 0.1 * jax.random.normal(k6, (output_size,), jnp.float32)
    return {"blocks": blocks, "linear": (w_lin, b_lin)}


# ---------------------------------------------------------------------------
# Pure-JAX reference (lax.conv) for correctness.
# ---------------------------------------------------------------------------
def _reference_conv_forward(x_nlc, params, *, ks):
    x = jnp.transpose(x_nlc, (0, 2, 1)).astype(jnp.float32)
    for i, layer in enumerate(params["blocks"]):
        dil = 2 ** i
        pad = dil * (ks - 1) // 2
        L = x.shape[-1]
        xpad = jnp.concatenate([x[:, :, L - pad:], x, x[:, :, :pad]], axis=-1)
        out = lax.conv_general_dilated(
            xpad, layer["w"], window_strides=(1,), padding="VALID",
            rhs_dilation=(dil,), dimension_numbers=("NCH", "OIH", "NCH"),
        ) + layer["b"][None, :, None]
        if layer.get("w_res") is not None:
            res = jnp.einsum("oc,ncl->nol", layer["w_res"], x) \
                  + layer["b_res"][None, :, None]
        else:
            res = x
        x = jnp.maximum(out, 0.0) + res
    y_class = jnp.mean(x, axis=2)
    w_lin, b_lin = params["linear"]
    return y_class @ w_lin.T + b_lin


if __name__ == "__main__":
    # Small shapes consistent with CONV forward (batch, seq, input_size).
    # L is a multiple of 128 so the in-kernel matmuls stay lane-dense and
    # pltpu.roll wraps cleanly.
    N, L, input_size, output_size = 2, 128, 8, 4
    hidden_channels = [16, 16, 32]   # exercises both 1x1-conv and identity residuals
    ks = 3

    key = jax.random.PRNGKey(0)
    kx, kp = jax.random.split(key)
    x = jax.random.normal(kx, (N, L, input_size), jnp.float32)
    params = init_params(kp, input_size, hidden_channels, output_size, ks)

    ref = _reference_conv_forward(x, params, ks=ks)

    # f32 path: strict check against the lax.conv reference.
    fwd_f32 = make_forward(params, ks=ks, compute_dtype=jnp.float32)
    y_f32 = jax.block_until_ready(fwd_f32(x))
    assert y_f32.shape == (N, output_size)
    max_err_f32 = float(jnp.max(jnp.abs(y_f32 - ref)))
    assert jnp.allclose(y_f32, ref, atol=1e-3, rtol=1e-3), max_err_f32

    # bf16-MXU path (v6e/v7x fast format): loose check (f32 epilogue kept).
    fwd_bf16 = make_forward(params, ks=ks, compute_dtype=jnp.bfloat16)
    y_bf16 = jax.block_until_ready(fwd_bf16(x))
    rel_err_bf16 = float(jnp.max(jnp.abs(y_bf16 - ref))
                         / (jnp.max(jnp.abs(ref)) + 1e-6))
    assert rel_err_bf16 < 0.1, rel_err_bf16

    print("KERNEL_OK")
</pallas_src>

<mosaic_0001>
module attributes {stable_mosaic.version = 11 : i64} {
  func.func @_cdil_fused_kernel(%arg0: i32, %arg1: memref<1x8x128xf32, #tpu.memory_space<vmem>>, %arg2: memref<32x24xf32, #tpu.memory_space<vmem>>, %arg3: memref<32x1xf32, #tpu.memory_space<vmem>>, %arg4: memref<16x48xf32, #tpu.memory_space<vmem>>, %arg5: memref<16x1xf32, #tpu.memory_space<vmem>>, %arg6: memref<64x48xf32, #tpu.memory_space<vmem>>, %arg7: memref<64x1xf32, #tpu.memory_space<vmem>>, %arg8: memref<4x32xf32, #tpu.memory_space<vmem>>, %arg9: memref<4x1xf32, #tpu.memory_space<vmem>>, %arg10: memref<1x4x1xf32, #tpu.memory_space<vmem>>) attributes {dimension_semantics = [#tpu.dimension_semantics<parallel>], iteration_bounds = array<i64: 2>, scalar_prefetch = 0 : i64, scratch_operands = 0 : i64, tpu.core_type = #tpu.core_type<tc>, window_params = [{transform_indices = @transform_0, window_bounds = array<i64: 1, 8, 128>}, {pipeline_mode = #tpu.pipeline_mode<synchronous>, transform_indices = @transform_1, window_bounds = array<i64: 32, 24>}, {pipeline_mode = #tpu.pipeline_mode<synchronous>, transform_indices = @transform_2, window_bounds = array<i64: 32, 1>}, {pipeline_mode = #tpu.pipeline_mode<synchronous>, transform_indices = @transform_3, window_bounds = array<i64: 16, 48>}, {pipeline_mode = #tpu.pipeline_mode<synchronous>, transform_indices = @transform_4, window_bounds = array<i64: 16, 1>}, {pipeline_mode = #tpu.pipeline_mode<synchronous>, transform_indices = @transform_5, window_bounds = array<i64: 64, 48>}, {pipeline_mode = #tpu.pipeline_mode<synchronous>, transform_indices = @transform_6, window_bounds = array<i64: 64, 1>}, {pipeline_mode = #tpu.pipeline_mode<synchronous>, transform_indices = @transform_7, window_bounds = array<i64: 4, 32>}, {pipeline_mode = #tpu.pipeline_mode<synchronous>, transform_indices = @transform_8, window_bounds = array<i64: 4, 1>}, {transform_indices = @transform_9, window_bounds = array<i64: 1, 4, 1>}]} {
    %c0 = arith.constant 0 : index
    %c0_0 = arith.constant 0 : index
    %c0_1 = arith.constant 0 : index
    %0 = vector.load %arg1[%c0, %c0_0, %c0_1] : memref<1x8x128xf32, #tpu.memory_space<vmem>>, vector<1x8x128xf32>
    %1 = vector.shape_cast %0 : vector<1x8x128xf32> to vector<8x128xf32>
    %c1_i32 = arith.constant 1 : i32
    %2 = tpu.dynamic_rotate %1 by %c1_i32 dim 1 : vector<8x128xf32>, i32 -> vector<8x128xf32>
    %c127_i32 = arith.constant 127 : i32
    %3 = tpu.dynamic_rotate %1 by %c127_i32 dim 1 : vector<8x128xf32>, i32 -> vector<8x128xf32>
    %4 = tpu.concatenate %2, %1, %3 in 0 : vector<8x128xf32>, vector<8x128xf32>, vector<8x128xf32> -> vector<24x128xf32>
    %c0_2 = arith.constant 0 : index
    %c0_3 = arith.constant 0 : index
    %5 = vector.load %arg2[%c0_2, %c0_3] : memref<32x24xf32, #tpu.memory_space<vmem>>, vector<32x24xf32>
    %cst = arith.constant dense<0.000000e+00> : vector<32x128xf32>
    %6 = tpu.matmul %5, %4, %cst {dimension_numbers = #tpu.dot_dimension_numbers<[1], [0], [0], [1], [0, 0, 1, 1], [], []>} : vector<32x24xf32>, vector<24x128xf32>, vector<32x128xf32> -> vector<32x128xf32>
    %c0_4 = arith.constant 0 : index
    %c0_5 = arith.constant 0 : index
    %7 = vector.load %arg3[%c0_4, %c0_5] : memref<32x1xf32, #tpu.memory_space<vmem>>, vector<32x1xf32>
    %8 = vector.broadcast %7 : vector<32x1xf32> to vector<32x128xf32>
    %9 = arith.addf %6, %8 : vector<32x128xf32>
    %10 = vector.extract_strided_slice %9 {offsets = [0, 0], sizes = [16, 128], strides = [1, 1]} : vector<32x128xf32> to vector<16x128xf32>
    %cst_6 = arith.constant 0.000000e+00 : f32
    %11 = vector.broadcast %cst_6 : f32 to vector<16x128xf32>
    %12 = arith.maximumf %10, %11 : vector<16x128xf32>
    %13 = vector.extract_strided_slice %9 {offsets = [16, 0], sizes = [16, 128], strides = [1, 1]} : vector<32x128xf32> to vector<16x128xf32>
    %14 = arith.addf %12, %13 : vector<16x128xf32>
    %c2_i32 = arith.constant 2 : i32
    %15 = tpu.dynamic_rotate %14 by %c2_i32 dim 1 : vector<16x128xf32>, i32 -> vector<16x128xf32>
    %c126_i32 = arith.constant 126 : i32
    %16 = tpu.dynamic_rotate %14 by %c126_i32 dim 1 : vector<16x128xf32>, i32 -> vector<16x128xf32>
    %17 = tpu.concatenate %15, %14, %16 in 0 : vector<16x128xf32>, vector<16x128xf32>, vector<16x128xf32> -> vector<48x128xf32>
    %c0_7 = arith.constant 0 : index
    %c0_8 = arith.constant 0 : index
    %18 = vector.load %arg4[%c0_7, %c0_8] : memref<16x48xf32, #tpu.memory_space<vmem>>, vector<16x48xf32>
    %cst_9 = arith.constant dense<0.000000e+00> : vector<16x128xf32>
    %19 = tpu.matmul %18, %17, %cst_9 {dimension_numbers = #tpu.dot_dimension_numbers<[1], [0], [0], [1], [0, 0, 1, 1], [], []>} : vector<16x48xf32>, vector<48x128xf32>, vector<16x128xf32> -> vector<16x128xf32>
    %c0_10 = arith.constant 0 : index
    %c0_11 = arith.constant 0 : index
    %20 = vector.load %arg5[%c0_10, %c0_11] : memref<16x1xf32, #tpu.memory_space<vmem>>, vector<16x1xf32>
    %21 = vector.broadcast %20 : vector<16x1xf32> to vector<16x128xf32>
    %22 = arith.addf %19, %21 : vector<16x128xf32>
    %cst_12 = arith.constant 0.000000e+00 : f32
    %23 = vector.broadcast %cst_12 : f32 to vector<16x128xf32>
    %24 = arith.maximumf %22, %23 : vector<16x128xf32>
    %25 = arith.addf %24, %14 : vector<16x128xf32>
    %c4_i32 = arith.constant 4 : i32
    %26 = tpu.dynamic_rotate %25 by %c4_i32 dim 1 : vector<16x128xf32>, i32 -> vector<16x128xf32>
    %c124_i32 = arith.constant 124 : i32
    %27 = tpu.dynamic_rotate %25 by %c124_i32 dim 1 : vector<16x128xf32>, i32 -> vector<16x128xf32>
    %28 = tpu.concatenate %26, %25, %27 in 0 : vector<16x128xf32>, vector<16x128xf32>, vector<16x128xf32> -> vector<48x128xf32>
    %c0_13 = arith.constant 0 : index
    %c0_14 = arith.constant 0 : index
    %29 = vector.load %arg6[%c0_13, %c0_14] : memref<64x48xf32, #tpu.memory_space<vmem>>, vector<64x48xf32>
    %cst_15 = arith.constant dense<0.000000e+00> : vector<64x128xf32>
    %30 = tpu.matmul %29, %28, %cst_15 {dimension_numbers = #tpu.dot_dimension_numbers<[1], [0], [0], [1], [0, 0, 1, 1], [], []>} : vector<64x48xf32>, vector<48x128xf32>, vector<64x128xf32> -> vector<64x128xf32>
    %c0_16 = arith.constant 0 : index
    %c0_17 = arith.constant 0 : index
    %31 = vector.load %arg7[%c0_16, %c0_17] : memref<64x1xf32, #tpu.memory_space<vmem>>, vector<64x1xf32>
    %32 = vector.broadcast %31 : vector<64x1xf32> to vector<64x128xf32>
    %33 = arith.addf %30, %32 : vector<64x128xf32>
    %34 = vector.extract_strided_slice %33 {offsets = [0, 0], sizes = [32, 128], strides = [1, 1]} : vector<64x128xf32> to vector<32x128xf32>
    %cst_18 = arith.constant 0.000000e+00 : f32
    %35 = vector.broadcast %cst_18 : f32 to vector<32x128xf32>
    %36 = arith.maximumf %34, %35 : vector<32x128xf32>
    %37 = vector.extract_strided_slice %33 {offsets = [32, 0], sizes = [32, 128], strides = [1, 1]} : vector<64x128xf32> to vector<32x128xf32>
    %38 = arith.addf %36, %37 : vector<32x128xf32>
    %c0_19 = arith.constant 0 : index
    %c0_20 = arith.constant 0 : index
    %39 = vector.load %arg8[%c0_19, %c0_20] : memref<4x32xf32, #tpu.memory_space<vmem>>, vector<4x32xf32>
    %cst_21 = arith.constant dense<0.000000e+00> : vector<4x128xf32>
    %40 = tpu.matmul %39, %38, %cst_21 {dimension_numbers = #tpu.dot_dimension_numbers<[1], [0], [0], [1], [0, 0, 1, 1], [], []>} : vector<4x32xf32>, vector<32x128xf32>, vector<4x128xf32> -> vector<4x128xf32>
    %cst_22 = arith.constant dense<0.000000e+00> : vector<4xf32>
    %41 = vector.multi_reduction <add>, %40, %cst_22 [1] : vector<4x128xf32> to vector<4xf32>
    %42 = vector.shape_cast %41 : vector<4xf32> to vector<4x1xf32>
    %cst_23 = arith.constant 1.280000e+02 : f32
    %43 = vector.broadcast %cst_23 : f32 to vector<4x1xf32>
    %44 = arith.divf %42, %43 : vector<4x1xf32>
    %c0_24 = arith.constant 0 : index
    %c0_25 = arith.constant 0 : index
    %45 = vector.load %arg9[%c0_24, %c0_25] : memref<4x1xf32, #tpu.memory_space<vmem>>, vector<4x1xf32>
    %46 = arith.addf %44, %45 : vector<4x1xf32>
    %c0_26 = arith.constant 0 : index
    %c0_27 = arith.constant 0 : index
    %c0_28 = arith.constant 0 : index
    %47 = vector.load %arg10[%c0_26, %c0_27, %c0_28] : memref<1x4x1xf32, #tpu.memory_space<vmem>>, vector<1x4x1xf32>
    %48 = vector.shape_cast %47 : vector<1x4x1xf32> to vector<4x1xf32>
    %49 = vector.shape_cast %46 : vector<4x1xf32> to vector<1x4x1xf32>
    tpu.vector_store %arg10[%c0_26, %c0_27, %c0_28], %49 {strides = array<i32>} : memref<1x4x1xf32, #tpu.memory_space<vmem>>, vector<1x4x1xf32>,
    return
  }
  func.func @transform_0(%arg0: i32) -> (i32, i32, i32) {
    %c0_i32 = arith.constant 0 : i32
    %c0_i32_0 = arith.constant 0 : i32
    %c0_i32_1 = arith.constant 0 : i32
    return %arg0, %c0_i32, %c0_i32_0 : i32, i32, i32
  }
  func.func @transform_1(%arg0: i32) -> (i32, i32) {
    %c0_i32 = arith.constant 0 : i32
    %c0_i32_0 = arith.constant 0 : i32
    %c0_i32_1 = arith.constant 0 : i32
    return %c0_i32, %c0_i32_0 : i32, i32
  }
  func.func @transform_2(%arg0: i32) -> (i32, i32) {
    %c0_i32 = arith.constant 0 : i32
    %c0_i32_0 = arith.constant 0 : i32
    %c0_i32_1 = arith.constant 0 : i32
    return %c0_i32, %c0_i32_0 : i32, i32
  }
  func.func @transform_3(%arg0: i32) -> (i32, i32) {
    %c0_i32 = arith.constant 0 : i32
    %c0_i32_0 = arith.constant 0 : i32
    %c0_i32_1 = arith.constant 0 : i32
    return %c0_i32, %c0_i32_0 : i32, i32
  }
  func.func @transform_4(%arg0: i32) -> (i32, i32) {
    %c0_i32 = arith.constant 0 : i32
    %c0_i32_0 = arith.constant 0 : i32
    %c0_i32_1 = arith.constant 0 : i32
    return %c0_i32, %c0_i32_0 : i32, i32
  }
  func.func @transform_5(%arg0: i32) -> (i32, i32) {
    %c0_i32 = arith.constant 0 : i32
    %c0_i32_0 = arith.constant 0 : i32
    %c0_i32_1 = arith.constant 0 : i32
    return %c0_i32, %c0_i32_0 : i32, i32
  }
  func.func @transform_6(%arg0: i32) -> (i32, i32) {
    %c0_i32 = arith.constant 0 : i32
    %c0_i32_0 = arith.constant 0 : i32
    %c0_i32_1 = arith.constant 0 : i32
    return %c0_i32, %c0_i32_0 : i32, i32
  }
  func.func @transform_7(%arg0: i32) -> (i32, i32) {
    %c0_i32 = arith.constant 0 : i32
    %c0_i32_0 = arith.constant 0 : i32
    %c0_i32_1 = arith.constant 0 : i32
    return %c0_i32, %c0_i32_0 : i32, i32
  }
  func.func @transform_8(%arg0: i32) -> (i32, i32) {
    %c0_i32 = arith.constant 0 : i32
    %c0_i32_0 = arith.constant 0 : i32
    %c0_i32_1 = arith.constant 0 : i32
    return %c0_i32, %c0_i32_0 : i32, i32
  }
  func.func @transform_9(%arg0: i32) -> (i32, i32, i32) {
    %c0_i32 = arith.constant 0 : i32
    %c0_i32_0 = arith.constant 0 : i32
    %c0_i32_1 = arith.constant 0 : i32
    return %arg0, %c0_i32, %c0_i32_0 : i32, i32, i32
  }
}

</mosaic_0001>

<llo_original>
// kernel: fwd.1
$region0: #{fwd.1}
  #allocation0 [shape = 'u32[]', space=smem, size = 0x4, offset = 0x4, fixed_abs, tag = 'smem constant byte address 0x4 - core index']
  #allocation1 [shape = 'u32[144,128]{1,0:T(1,128)}', space=vmem, size = 0x12000, scoped, tag = 'internal scratch']
  %s0 = inlined_call_operand.hbm [shape: f32[2,8,128], index: 0, kind: input, shape index: {}]
  %s1 = inlined_call_operand.hbm [shape: f32[32,24], index: 1, kind: input, shape index: {}]
  %s2 = inlined_call_operand.hbm [shape: f32[32,1], index: 2, kind: input, shape index: {}]
  %s3 = inlined_call_operand.hbm [shape: f32[16,48], index: 3, kind: input, shape index: {}]
  %s4 = inlined_call_operand.vmem [shape: f32[16,1], index: 4, kind: input, shape index: {}]
  %s5 = inlined_call_operand.hbm [shape: f32[64,48], index: 5, kind: input, shape index: {}]
  %s6 = inlined_call_operand.hbm [shape: f32[64,1], index: 6, kind: input, shape index: {}]
  %s7 = inlined_call_operand.vmem [shape: f32[4,32], index: 7, kind: input, shape index: {}]
  %s8 = inlined_call_operand.vmem [shape: f32[4,1], index: 8, kind: input, shape index: {}]
  %s9 = inlined_call_operand.vmem [shape: f32[2,4,1], index: 9, kind: output, shape index: {}]
  %s10 = sld [smem:[#allocation0]]
  $region93: #{fwd.1} parent=0
    _
  %s12 = ssub.s32 1, %s10
  %s13 = scalar_select 0, %s12, %s10
  $region1: #{fwd.1} parent=0
    #allocation2 [shape = 'u8[8192]{0}', space=vmem, size = 0x2000, scoped, tag = 'input window, operand 0']
    #allocation3 [shape = 's32[2]{0}', space=sflag, size = 0x8, scoped, tag = 'scoped memory for fwd.1']
    #allocation4 [shape = 'u8[16384]{0}', space=vmem, size = 0x4000, scoped, tag = 'input window, operand 1, single buffered']
    #allocation5 [shape = 's32[1]{0}', space=sflag, size = 0x4, scoped, tag = 'scoped memory for fwd.1']
    #allocation6 [shape = 'u8[16384]{0}', space=vmem, size = 0x4000, scoped, tag = 'input window, operand 2, single buffered']
    #allocation7 [shape = 'u8[8192]{0}', space=vmem, size = 0x2000, scoped, tag = 'input window, operand 3, single buffered']
    #allocation8 [shape = 's32[1]{0}', space=sflag, size = 0x4, scoped, tag = 'scoped memory for fwd.1']
    #allocation9 [shape = 'u8[32768]{0}', space=vmem, size = 0x8000, scoped, tag = 'input window, operand 5, single buffered']
    #allocation10 [shape = 'u8[32768]{0}', space=vmem, size = 0x8000, scoped, tag = 'input window, operand 6, single buffered']
    #allocation11 [shape = 's32[1]{0}', space=sflag, size = 0x4, scoped, tag = 'scoped memory for fwd.1']
    %14 = vsyncpa [#allocation3], 0
    %s15 = scalar_lea.sflag [#allocation3], 1
    %16 = vsyncpa %s15, 0
    %17 = vsyncpa [#allocation5], 0
    %18 = vsyncpa [#allocation8], 0
    %19 = vsyncpa [#allocation11], 0
    loop: start=0, step=1, limit=4
    $region2: #{fwd.1} parent=1 // loop_pre_header
      _
    $region3: #{fwd.1} parent=1 // loop_header
      %s21 = sphi 0, %s25
      %p22 = scmp.ge.s32.totalorder %s21, 4
      %s31 = sphi 0, %s33
      %s34 = sphi 0, %s31
      %s35 = sphi 0, %s34
      %s51 = sphi 0, %s35
      %s55 = sphi 0, %s55
      %s57 = sphi 0, %s55
      %s58 = sphi 0, %s57
      %s72 = sphi 0, %s58
      %s76 = sphi 0, %s76
      %s78 = sphi 0, %s76
      %s79 = sphi 0, %s78
      %s93 = sphi 0, %s79
      %s97 = sphi 0, %s97
      %s99 = sphi 0, %s97
      %s100 = sphi 0, %s99
      %s114 = sphi 0, %s100
      %s118 = sphi 0, %s118
      %s120 = sphi 0, %s118
      %s121 = sphi 0, %s120
      %s135 = sphi 0, %s121
      %s139 = sphi 0, %s139
      %s141 = sphi 0, %s139
      %s142 = sphi 0, %s141
      %s156 = sphi 0, %s142
      %s160 = sphi 0, %s160
      %s162 = sphi 0, %s160
      %s163 = sphi 0, %s162
      %s177 = sphi 0, %s163
      %s181 = sphi 0, %s181
      %s183 = sphi 0, %s181
      %s184 = sphi 0, %s183
      %s198 = sphi 0, %s184
      %s202 = sphi 0, %s202
      %s204 = sphi 0, %s202
      %s205 = sphi 0, %s204
      %s219 = sphi 0, %s205
      %s225 = sphi 0, %s227
      %s228 = sphi 0, %s225
      %s229 = sphi 0, %s228
      %s245 = sphi 0, %s229
    $region4: #{fwd.1} parent=1 // loop_header_branch
      %24 = sbr.rel (%p22) target = $region8
    $region5: #{fwd.1} parent=1 // loop_body
      %s26 = ssub.s32 %s21, 1
      %s27 = ssub.s32 %s21, 2
      %s28 = sadd.s32 %s21, 1
      %s29 = ssub.s32 %s21, %s28
      %p30 = scmp.eq.s32.totalorder %s29, 0
      %s32 = sadd.s32 %s31, 1
      %s33 = scalar_select %p30, %s31, %s32
      %p36 = pneg %p30
      %p37 = scmp.eq.s32.totalorder %s21, 1
      %p38 = por %p36, %p37
      %p39 = scmp.ne.s32.totalorder %s31, %s34
      %p40 = scmp.eq.s32.totalorder %s21, 0
      %p41 = por %p39, %p40
      %p42 = scmp.ne.s32.totalorder %s31, %s34
      %p43 = scmp.eq.s32.totalorder %s26, 1
      %p44 = por %p42, %p43
      %p45 = scmp.ne.s32.totalorder %s34, %s35
      %p46 = scmp.eq.s32.totalorder %s26, 0
      %p47 = por %p45, %p46
      %p48 = scmp.ne.s32.totalorder %s34, %s35
      %p49 = scmp.eq.s32.totalorder %s27, 1
      %p50 = por %p48, %p49
      %p52 = scmp.ne.s32.totalorder %s35, %s51
      %p53 = scmp.eq.s32.totalorder %s27, 0
      %p54 = por %p52, %p53
      %s56 = sadd.s32 %s55, 1
      %p59 = scmp.eq.s32.totalorder %s21, 1
      %p60 = scmp.ne.s32.totalorder %s55, %s57
      %p61 = scmp.eq.s32.totalorder %s21, 0
      %p62 = por %p60, %p61
      %p63 = scmp.ne.s32.totalorder %s55, %s57
      %p64 = scmp.eq.s32.totalorder %s26, 1
      %p65 = por %p63, %p64
      %p66 = scmp.ne.s32.totalorder %s57, %s58
      %p67 = scmp.eq.s32.totalorder %s26, 0
      %p68 = por %p66, %p67
      %p69 = scmp.ne.s32.totalorder %s57, %s58
      %p70 = scmp.eq.s32.totalorder %s27, 1
      %p71 = por %p69, %p70
      %p73 = scmp.ne.s32.totalorder %s58, %s72
      %p74 = scmp.eq.s32.totalorder %s27, 0
      %p75 = por %p73, %p74
      %s77 = sadd.s32 %s76, 1
      %p80 = scmp.eq.s32.totalorder %s21, 1
      %p81 = scmp.ne.s32.totalorder %s76, %s78
      %p82 = scmp.eq.s32.totalorder %s21, 0
      %p83 = por %p81, %p82
      %p84 = scmp.ne.s32.totalorder %s76, %s78
      %p85 = scmp.eq.s32.totalorder %s26, 1
      %p86 = por %p84, %p85
      %p87 = scmp.ne.s32.totalorder %s78, %s79
      %p88 = scmp.eq.s32.totalorder %s26, 0
      %p89 = por %p87, %p88
      %p90 = scmp.ne.s32.totalorder %s78, %s79
      %p91 = scmp.eq.s32.totalorder %s27, 1
      %p92 = por %p90, %p91
      %p94 = scmp.ne.s32.totalorder %s79, %s93
      %p95 = scmp.eq.s32.totalorder %s27, 0
      %p96 = por %p94, %p95
      %s98 = sadd.s32 %s97, 1
      %p101 = scmp.eq.s32.totalorder %s21, 1
      %p102 = scmp.ne.s32.totalorder %s97, %s99
      %p103 = scmp.eq.s32.totalorder %s21, 0
      %p104 = por %p102, %p103
      %p105 = scmp.ne.s32.totalorder %s97, %s99
      %p106 = scmp.eq.s32.totalorder %s26, 1
      %p107 = por %p105, %p106
      %p108 = scmp.ne.s32.totalorder %s99, %s100
      %p109 = scmp.eq.s32.totalorder %s26, 0
      %p110 = por %p108, %p109
      %p111 = scmp.ne.s32.totalorder %s99, %s100
      %p112 = scmp.eq.s32.totalorder %s27, 1
      %p113 = por %p111, %p112
      %p115 = scmp.ne.s32.totalorder %s100, %s114
      %p116 = scmp.eq.s32.totalorder %s27, 0
      %p117 = por %p115, %p116
      %s119 = sadd.s32 %s118, 1
      %p122 = scmp.eq.s32.totalorder %s21, 1
      %p123 = scmp.ne.s32.totalorder %s118, %s120
      %p124 = scmp.eq.s32.totalorder %s21, 0
      %p125 = por %p123, %p124
      %p126 = scmp.ne.s32.totalorder %s118, %s120
      %p127 = scmp.eq.s32.totalorder %s26, 1
      %p128 = por %p126, %p127
      %p129 = scmp.ne.s32.totalorder %s120, %s121
      %p130 = scmp.eq.s32.totalorder %s26, 0
      %p131 = por %p129, %p130
      %p132 = scmp.ne.s32.totalorder %s120, %s121
      %p133 = scmp.eq.s32.totalorder %s27, 1
      %p134 = por %p132, %p133
      %p136 = scmp.ne.s32.totalorder %s121, %s135
      %p137 = scmp.eq.s32.totalorder %s27, 0
      %p138 = por %p136, %p137
      %s140 = sadd.s32 %s139, 1
      %p143 = scmp.eq.s32.totalorder %s21, 1
      %p144 = scmp.ne.s32.totalorder %s139, %s141
      %p145 = scmp.eq.s32.totalorder %s21, 0
      %p146 = por %p144, %p145
      %p147 = scmp.ne.s32.totalorder %s139, %s141
      %p148 = scmp.eq.s32.totalorder %s26, 1
      %p149 = por %p147, %p148
      %p150 = scmp.ne.s32.totalorder %s141, %s142
      %p151 = scmp.eq.s32.totalorder %s26, 0
      %p152 = por %p150, %p151
      %p153 = scmp.ne.s32.totalorder %s141, %s142
      %p154 = scmp.eq.s32.totalorder %s27, 1
      %p155 = por %p153, %p154
      %p157 = scmp.ne.s32.totalorder %s142, %s156
      %p158 = scmp.eq.s32.totalorder %s27, 0
      %p159 = por %p157, %p158
      %s161 = sadd.s32 %s160, 1
      %p164 = scmp.eq.s32.totalorder %s21, 1
      %p165 = scmp.ne.s32.totalorder %s160, %s162
      %p166 = scmp.eq.s32.totalorder %s21, 0
      %p167 = por %p165, %p166
      %p168 = scmp.ne.s32.totalorder %s160, %s162
      %p169 = scmp.eq.s32.totalorder %s26, 1
      %p170 = por %p168, %p169
      %p171 = scmp.ne.s32.totalorder %s162, %s163
      %p172 = scmp.eq.s32.totalorder %s26, 0
      %p173 = por %p171, %p172
      %p174 = scmp.ne.s32.totalorder %s162, %s163
      %p175 = scmp.eq.s32.totalorder %s27, 1
      %p176 = por %p174, %p175
      %p178 = scmp.ne.s32.totalorder %s163, %s177
      %p179 = scmp.eq.s32.totalorder %s27, 0
      %p180 = por %p178, %p179
      %s182 = sadd.s32 %s181, 1
      %p185 = scmp.eq.s32.totalorder %s21, 1
      %p186 = scmp.ne.s32.totalorder %s181, %s183
      %p187 = scmp.eq.s32.totalorder %s21, 0
      %p188 = por %p186, %p187
      %p189 = scmp.ne.s32.totalorder %s181, %s183
      %p190 = scmp.eq.s32.totalorder %s26, 1
      %p191 = por %p189, %p190
      %p192 = scmp.ne.s32.totalorder %s183, %s184
      %p193 = scmp.eq.s32.totalorder %s26, 0
      %p194 = por %p192, %p193
      %p195 = scmp.ne.s32.totalorder %s183, %s184
      %p196 = scmp.eq.s32.totalorder %s27, 1
      %p197 = por %p195, %p196
      %p199 = scmp.ne.s32.totalorder %s184, %s198
      %p200 = scmp.eq.s32.totalorder %s27, 0
      %p201 = por %p199, %p200
      %s203 = sadd.s32 %s202, 1
      %p206 = scmp.eq.s32.totalorder %s21, 1
      %p207 = scmp.ne.s32.totalorder %s202, %s204
      %p208 = scmp.eq.s32.totalorder %s21, 0
      %p209 = por %p207, %p208
      %p210 = scmp.ne.s32.totalorder %s202, %s204
      %p211 = scmp.eq.s32.totalorder %s26, 1
      %p212 = por %p210, %p211
      %p213 = scmp.ne.s32.totalorder %s204, %s205
      %p214 = scmp.eq.s32.totalorder %s26, 0
      %p215 = por %p213, %p214
      %p216 = scmp.ne.s32.totalorder %s204, %s205
      %p217 = scmp.eq.s32.totalorder %s27, 1
      %p218 = por %p216, %p217
      %p220 = scmp.ne.s32.totalorder %s205, %s219
      %p221 = scmp.eq.s32.totalorder %s27, 0
      %p222 = por %p220, %p221
      %s223 = ssub.s32 %s21, %s28
      %p224 = scmp.eq.s32.totalorder %s223, 0
      %s226 = sadd.s32 %s225, 1
      %s227 = scalar_select %p224, %s225, %s226
      %p230 = pneg %p224
      %p231 = scmp.eq.s32.totalorder %s21, 1
      %p232 = por %p230, %p231
      %p233 = scmp.ne.s32.totalorder %s225, %s228
      %p234 = scmp.eq.s32.totalorder %s21, 0
      %p235 = por %p233, %p234
      %p236 = scmp.ne.s32.totalorder %s225, %s228
      %p237 = scmp.eq.s32.totalorder %s26, 1
      %p238 = por %p236, %p237
      %p239 = scmp.ne.s32.totalorder %s228, %s229
      %p240 = scmp.eq.s32.totalorder %s26, 0
      %p241 = por %p239, %p240
      %p242 = scmp.ne.s32.totalorder %s228, %s229
      %p243 = scmp.eq.s32.totalorder %s27, 1
      %p244 = por %p242, %p243
      %p246 = scmp.ne.s32.totalorder %s229, %s245
      %p247 = scmp.eq.s32.totalorder %s27, 0
      %p248 = por %p246, %p247
      %p249 = scmp.le.s32.totalorder 1, %s21
      %p250 = scmp.lt.s32.totalorder %s21, 3
      %p251 = pnand %p249, %p250
      %p252 = pneg %p251
      // Predicated region
      $region9: #{fwd.1} parent=5 // pred_check
        _
      $region10: #{fwd.1} parent=5 // pred_check_branch
        %254 = sbr.rel (%p251) target = $region12
      $region11: #{fwd.1} parent=5 // pred_region
        %s255 = ssub.s32 %s21, 1
        // Predicated region
        $region13: #{fwd.1} parent=11 // pred_check
          %p256 = pneg %p68
        $region14: #{fwd.1} parent=11 // pred_check_branch
          %258 = sbr.rel (%p256) target = $region16
        $region15: #{fwd.1} parent=11 // pred_region
          %s260 = ssub.s32 512, 512
          %261 = vsyncadd [#allocation5], %s260
          %s262 = sshll.u32 [#allocation4], 4
          %s263 = int_to_ptr.vmem [resolvable:$true] %s262
          %268 = dma.hbm_to_vmem [thread:$0]  %s1, 512, %s263, [#allocation5], 128, 128, 8
        $region16: #{fwd.1} parent=11 // pred_fallthru
          _
        // Predicated region
        $region17: #{fwd.1} parent=11 // pred_check
          %p269 = pneg %p89
        $region18: #{fwd.1} parent=11 // pred_check_branch
          %271 = sbr.rel (%p269) target = $region20
        $region19: #{fwd.1} parent=11 // pred_region
          %s273 = ssub.s32 512, 512
          %274 = vsyncadd [#allocation5], %s273
          %s275 = sshll.u32 [#allocation6], 4
          %s276 = int_to_ptr.vmem [resolvable:$true] %s275
          %281 = dma.hbm_to_vmem [thread:$0]  %s2, 512, %s276, [#allocation5], 128, 128, 8
        $region20: #{fwd.1} parent=11 // pred_fallthru
          _
        // Predicated region
        $region21: #{fwd.1} parent=11 // pred_check
          %p282 = pneg %p110
        $region22: #{fwd.1} parent=11 // pred_check_branch
          %284 = sbr.rel (%p282) target = $region24
        $region23: #{fwd.1} parent=11 // pred_region
          %s286 = ssub.s32 256, 256
          %287 = vsyncadd [#allocation8], %s286
          %s288 = sshll.u32 [#allocation7], 4
          %s289 = int_to_ptr.vmem [resolvable:$true] %s288
          %294 = dma.hbm_to_vmem [thread:$0]  %s3, 256, %s289, [#allocation8], 128, 128, 8
        $region24: #{fwd.1} parent=11 // pred_fallthru
          _
        // Predicated region
        $region25: #{fwd.1} parent=11 // pred_check
          %p295 = pneg %p131
        $region26: #{fwd.1} parent=11 // pred_check_branch
          %297 = sbr.rel (%p295) target = $region28
        $region27: #{fwd.1} parent=11 // pred_region
          _
        $region28: #{fwd.1} parent=11 // pred_fallthru
          _
        // Predicated region
        $region29: #{fwd.1} parent=11 // pred_check
          %p298 = pneg %p152
        $region30: #{fwd.1} parent=11 // pred_check_branch
          %300 = sbr.rel (%p298) target = $region32
        $region31: #{fwd.1} parent=11 // pred_region
          %s302 = ssub.s32 1024, 1024
          %303 = vsyncadd [#allocation8], %s302
          %s304 = sshll.u32 [#allocation9], 4
          %s305 = int_to_ptr.vmem [resolvable:$true] %s304
          %310 = dma.hbm_to_vmem [thread:$0]  %s5, 1024, %s305, [#allocation8], 128, 128, 8
        $region32: #{fwd.1} parent=11 // pred_fallthru
          _
        // Predicated region
        $region33: #{fwd.1} parent=11 // pred_check
          %p311 = pneg %p173
        $region34: #{fwd.1} parent=11 // pred_check_branch
          %313 = sbr.rel (%p311) target = $region36
        $region35: #{fwd.1} parent=11 // pred_region
          %s315 = ssub.s32 1024, 1024
          %316 = vsyncadd [#allocation11], %s315
          %s317 = sshll.u32 [#allocation10], 4
          %s318 = int_to_ptr.vmem [resolvable:$true] %s317
          %323 = dma.hbm_to_vmem [thread:$0]  %s6, 1024, %s318, [#allocation11], 128, 128, 8
        $region36: #{fwd.1} parent=11 // pred_fallthru
          _
        // Predicated region
        $region37: #{fwd.1} parent=11 // pred_check
          %p324 = pneg %p194
        $region38: #{fwd.1} parent=11 // pred_check_branch
          %326 = sbr.rel (%p324) target = $region40
        $region39: #{fwd.1} parent=11 // pred_region
          _
        $region40: #{fwd.1} parent=11 // pred_fallthru
          _
        // Predicated region
        $region41: #{fwd.1} parent=11 // pred_check
          %p327 = pneg %p215
        $region42: #{fwd.1} parent=11 // pred_check_branch
          %329 = sbr.rel (%p327) target = $region44
        $region43: #{fwd.1} parent=11 // pred_region
          _
        $region44: #{fwd.1} parent=11 // pred_fallthru
          _
      $region12: #{fwd.1} parent=5 // pred_fallthru
        _
      %p330 = scmp.lt.s32.totalorder %s21, 2
      // Predicated region
      $region45: #{fwd.1} parent=5 // pred_check
        %p331 = pneg %p330
      $region46: #{fwd.1} parent=5 // pred_check_branch
        %333 = sbr.rel (%p331) target = $region48
      $region47: #{fwd.1} parent=5 // pred_region
        // Predicated region
        $region49: #{fwd.1} parent=47 // pred_check
          %p334 = pneg %p41
        $region50: #{fwd.1} parent=47 // pred_check_branch
          %336 = sbr.rel (%p334) target = $region52
        $region51: #{fwd.1} parent=47 // pred_region
          %s337 = sand.u32 %s31, 1
          %s338 = scalar_lea.sflag [#allocation3], %s337
          %s339 = sand.u32 %s31, 1
          %s340 = smul.addr %s339, 8
          %s341 = scalar_lea.vmem [#allocation2], %s340
          %s343 = ssub.s32 128, 128
          %344 = vsyncadd %s338, %s343
          %s345 = smul.addr %s21, 128
          %s346 = scalar_lea.hbm %s0, %s345
          %s348 = sshll.u32 %s341, 4
          %s349 = int_to_ptr.vmem [resolvable:$true] %s348
          %351 = dma.hbm_to_vmem [thread:$0]  %s346, 128, %s349, %s338
        $region52: #{fwd.1} parent=47 // pred_fallthru
          _
      $region48: #{fwd.1} parent=5 // pred_fallthru
        _
      %p352 = scmp.le.s32.totalorder 1, %s21
      %p353 = scmp.lt.s32.totalorder %s21, 3
      %p354 = pnand %p352, %p353
      %p355 = pneg %p354
      // Predicated region
      $region53: #{fwd.1} parent=5 // pred_check
        _
      $region54: #{fwd.1} parent=5 // pred_check_branch
        %357 = sbr.rel (%p354) target = $region56
      $region55: #{fwd.1} parent=5 // pred_region
        %s358 = ssub.s32 %s21, 1
        %s359 = sand.u32 %s34, 1
        %s360 = scalar_lea.sflag [#allocation3], %s359
        %s361 = sand.u32 %s34, 1
        %s362 = smul.addr %s361, 8
        %s363 = scalar_lea.vmem [#allocation2], %s362
        // Predicated region
        $region57: #{fwd.1} parent=55 // pred_check
          %p364 = pneg %p47
        $region58: #{fwd.1} parent=55 // pred_check_branch
          %366 = sbr.rel (%p364) target = $region60
        $region59: #{fwd.1} parent=55 // pred_region
          %367 = dma.done %s360, 128
        $region60: #{fwd.1} parent=55 // pred_fallthru
          _
        // Predicated region
        $region61: #{fwd.1} parent=55 // pred_check
          %p368 = pneg %p68
        $region62: #{fwd.1} parent=55 // pred_check_branch
          %370 = sbr.rel (%p368) target = $region64
        $region63: #{fwd.1} parent=55 // pred_region
          %371 = dma.done [#allocation5], 512
        $region64: #{fwd.1} parent=55 // pred_fallthru
          _
        // Predicated region
        $region65: #{fwd.1} parent=55 // pred_check
          %p372 = pneg %p89
        $region66: #{fwd.1} parent=55 // pred_check_branch
          %374 = sbr.rel (%p372) target = $region68
        $region67: #{fwd.1} parent=55 // pred_region
          %375 = dma.done [#allocation5], 512
        $region68: #{fwd.1} parent=55 // pred_fallthru
          _
        // Predicated region
        $region69: #{fwd.1} parent=55 // pred_check
          %p376 = pneg %p110
        $region70: #{fwd.1} parent=55 // pred_check_branch
          %378 = sbr.rel (%p376) target = $region72
        $region71: #{fwd.1} parent=55 // pred_region
          %379 = dma.done [#allocation8], 256
        $region72: #{fwd.1} parent=55 // pred_fallthru
          _
        // Predicated region
        $region73: #{fwd.1} parent=55 // pred_check
          %p380 = pneg %p152
        $region74: #{fwd.1} parent=55 // pred_check_branch
          %382 = sbr.rel (%p380) target = $region76
        $region75: #{fwd.1} parent=55 // pred_region
          %383 = dma.done [#allocation8], 1024
        $region76: #{fwd.1} parent=55 // pred_fallthru
          _
        // Predicated region
        $region77: #{fwd.1} parent=55 // pred_check
          %p384 = pneg %p173
        $region78: #{fwd.1} parent=55 // pred_check_branch
          %386 = sbr.rel (%p384) target = $region80
        $region79: #{fwd.1} parent=55 // pred_region
          %387 = dma.done [#allocation11], 1024
        $region80: #{fwd.1} parent=55 // pred_fallthru
          _
        %s388 = sand.u32 %s34, 1
        %s389 = scalar_lea.sflag [#allocation3], %s388
        %s390 = sand.u32 %s34, 1
        %s391 = smul.addr %s390, 8
        %s392 = scalar_lea.vmem [#allocation2], %s391
        %p393 = pneg %p47
        %p394 = pneg %p44
        %p395 = pneg %p68
        %p396 = pneg %p65
        %p397 = pneg %p89
        %p398 = pneg %p86
        %p399 = pneg %p110
        %p400 = pneg %p107
        %p401 = pneg %p131
        %p402 = pneg %p128
        %p403 = pneg %p152
        %p404 = pneg %p149
        %p405 = pneg %p173
        %p406 = pneg %p170
        %p407 = pneg %p194
        %p408 = pneg %p191
        %p409 = pneg %p215
        %p410 = pneg %p212
        %p411 = pneg %p241
        %p412 = pneg %p238
        %p413 = scmp.lt.s32.totalorder %s26, 1
        %s414 = scalar_select %p413, %s26, 1
        %s415 = smul.addr %s414, 4
        %s416 = scalar_lea.vmem %s9, %s415
        %p417 = scmp.lt.s32.totalorder %s26, 1
        %s418 = scalar_select %p417, %s26, 1
        %s419 = smul.addr %s418, 4
        %s420 = scalar_lea.vmem %s9, %s419
        %v421 = vld [vmem:[%s363] sm:$0xff]
        %422 = vrot.lane.b32.xlu0 %v421, 1
        %v423 = vpop.permute.xlu0 %422
        %424 = vrot.lane.b32.xlu0 %v421, 127
        %v425 = vpop.permute.xlu0 %424
        %v426 = vld [vmem:[#allocation4] sm:$0xff]
        %v427 = vld [vmem:[#allocation4 + $0x8] sm:$0xff]
        %v428 = vld [vmem:[#allocation4 + $0x10] sm:$0xff]
        %v429 = vld [vmem:[#allocation4 + $0x18] sm:$0xff]
        %v430 = vld [vmem:[#allocation6] sm:$0xff]
        %v431 = vld [vmem:[#allocation6 + $0x8] sm:$0xff]
        %v432 = vld [vmem:[#allocation6 + $0x10] sm:$0xff]
        %v433 = vld [vmem:[#allocation6 + $0x18] sm:$0xff]
        %435 = vset.pattern.permute.xlu0 0
        %436 = vperm.xlu0 %435, %v430
        %v437 = vpop.permute.xlu0 %436
        %440 = vset.pattern.permute.xlu0 0
        %441 = vperm.xlu0 %440, %v431
        %v442 = vpop.permute.xlu0 %441
        %445 = vset.pattern.permute.xlu0 0
        %446 = vperm.xlu0 %445, %v432
        %v447 = vpop.permute.xlu0 %446
        %450 = vset.pattern.permute.xlu0 0
        %451 = vperm.xlu0 %450, %v433
        %v452 = vpop.permute.xlu0 %451
        %vm454 = vcmask 195584
        %v456 = vsel %vm454, %v426, 0
        %v459 = vsel %vm454, %v427, 0
        %v462 = vsel %vm454, %v428, 0
        %v465 = vsel %vm454, %v429, 0
        %467 = vmatprep.subr.mxu0 0.0
        %468 = vmatpush1.msra.mxu0 %v423
        %469 = vmatprep.subr.mxu0 0.0
        %470 = vmatpush1.msra.mxu0 %v421
        %471 = vmatprep.subr.mxu0 0.0
        %472 = vmatpush1.msra.mxu0 %v425
        %473 = vmatprep.subr.mxu0 0.0
        %474 = vmatpush1.msra.mxu0 0.0
        %475 = vmatprep.subr.mxu0 0.0
        %476 = vmatpush1.msra.mxu0 0.0
        %477 = vmatprep.subr.mxu0 0.0
        %478 = vmatpush1.msra.mxu0 0.0
        %479 = vmatprep.subr.mxu0 0.0
        %480 = vmatpush1.msra.mxu0 0.0
        %481 = vmatprep.subr.mxu0 0.0
        %482 = vmatpush1.msra.mxu0 0.0
        %483 = vmatprep.subr.mxu0 0.0
        %484 = vmatpush1.msra.mxu0 0.0
        %485 = vmatprep.subr.mxu0 0.0
        %486 = vmatpush1.msra.mxu0 0.0
        %487 = vmatprep.subr.mxu0 0.0
        %488 = vmatpush1.msra.mxu0 0.0
        %489 = vmatprep.subr.mxu0 0.0
        %490 = vmatpush1.msra.mxu0 0.0
        %491 = vmatprep.subr.mxu0 0.0
        %492 = vmatpush1.msra.mxu0 0.0
        %493 = vmatprep.subr.mxu0 0.0
        %494 = vmatpush1.msra.mxu0 0.0
        %495 = vmatprep.subr.mxu0 0.0
        %496 = vmatpush1.msra.mxu0 0.0
        %497 = vmatprep.subr.mxu0 0.0
        %498 = vmatpush1.msra.mxu0 0.0
        %499 = vmatprep.subr.mxu0 0.0
        %500 = vmatpush1.msra.mxu0 0.0
        %501 = vmatprep.subr.mxu0 0.0
        %502 = vmatpush1.msra.mxu0 0.0
        %503 = vmatprep.subr.mxu0 0.0
        %504 = vmatpush1.msra.mxu0 0.0
        %505 = vmatprep.subr.mxu0 0.0
        %506 = vmatpush1.msra.mxu0 0.0
        %507 = vmatprep.subr.mxu0 0.0
        %508 = vmatpush1.msra.mxu0 0.0
        %509 = vmatprep.subr.mxu0 0.0
        %510 = vmatpush1.msra.mxu0 0.0
        %511 = vmatprep.subr.mxu0 0.0
        %512 = vmatpush1.msra.mxu0 0.0
        %513 = vmatprep.subr.mxu0 0.0
        %514 = vmatpush1.msra.mxu0 0.0
        %515 = vmatprep.subr.mxu0 0.0
        %516 = vmatpush1.msra.mxu0 0.0
        %517 = vmatprep.subr.mxu0 0.0
        %518 = vmatpush1.msra.mxu0 0.0
        %519 = vmatprep.subr.mxu0 0.0
        %520 = vmatpush1.msra.mxu0 0.0
        %521 = vmatprep.subr.mxu0 0.0
        %522 = vmatpush1.msra.mxu0 0.0
        %523 = vmatprep.subr.mxu0 0.0
        %524 = vmatpush1.msra.mxu0 0.0
        %525 = vmatprep.subr.mxu0 0.0
        %526 = vmatpush1.msra.mxu0 0.0
        %527 = vmatprep.subr.mxu0 0.0
        %528 = vmatpush1.msra.mxu0 0.0
        %529 = vmatprep.subr.mxu0 0.0
        %530 = vmatpush1.msra.mxu0 0.0
        %531 = vmatprep.mubr.f32.mxu0 0.0
        %532 = vmatmul.mubr.f32.gmra.mrb[0].mxu0 %v456
        %v533 = vpop.f32.mrb[0].mxu0
        %v534 = vadd.f32 %v437, %v533
        %v535 = vpop.f32.mrb[0].mxu0
        %536 = vmatprep.mubr.f32.mxu0 0.0
        %537 = vmatmul.mubr.f32.gmra.mrb[0].mxu0 %v459
        %v538 = vpop.f32.mrb[0].mxu0
        %v539 = vadd.f32 %v442, %v538
        %v540 = vpop.f32.mrb[0].mxu0
        %541 = vmatprep.mubr.f32.mxu0 0.0
        %542 = vmatmul.mubr.f32.gmra.mrb[0].mxu0 %v462
        %v543 = vpop.f32.mrb[0].mxu0
        %v544 = vadd.f32 %v447, %v543
        %v545 = vpop.f32.mrb[0].mxu0
        %546 = vmatprep.mubr.f32.mxu0 0.0
        %547 = vmatmul.mubr.f32.gmra.mrb[0].mxu0 %v465
        %v548 = vpop.f32.mrb[0].mxu0
        %v549 = vadd.f32 %v452, %v548
        %v550 = vpop.f32.mrb[0].mxu0
        %551 = vdwg.mxu0
        %v552 = vmax.f32 %v534, 0.0
        %v553 = vmax.f32 %v539, 0.0
        %v554 = vadd.f32 %v552, %v544
        %v555 = vadd.f32 %v553, %v549
        %556 = vrot.lane.b32.xlu0 %v554, 2
        %v557 = vpop.permute.xlu0 %556
        %558 = vrot.lane.b32.xlu0 %v555, 2
        %v559 = vpop.permute.xlu0 %558
        %560 = vrot.lane.b32.xlu0 %v554, 126
        %v561 = vpop.permute.xlu0 %560
        %562 = vrot.lane.b32.xlu0 %v555, 126
        %v563 = vpop.permute.xlu0 %562
        %v564 = vld [vmem:[#allocation7] sm:$0xff]
        %v565 = vld [vmem:[#allocation7 + $0x8] sm:$0xff]
        %v566 = vld [vmem:[%s4] sm:$0xff]
        %v567 = vld [vmem:[%s4 + $0x8] sm:$0xff]
        %569 = vset.pattern.permute.xlu0 0
        %570 = vperm.xlu0 %569, %v566
        %v571 = vpop.permute.xlu0 %570
        %574 = vset.pattern.permute.xlu0 0
        %575 = vperm.xlu0 %574, %v567
        %v576 = vpop.permute.xlu0 %575
        %vm578 = vcmask 392192
        %v580 = vsel %vm578, %v564, 0
        %v583 = vsel %vm578, %v565, 0
        %585 = vmatprep.subr.mxu0 0.0
        %586 = vmatpush1.msra.mxu0 %v557
        %587 = vmatprep.subr.mxu0 0.0
        %588 = vmatpush1.msra.mxu0 %v559
        %589 = vmatprep.subr.mxu0 0.0
        %590 = vmatpush1.msra.mxu0 %v554
        %591 = vmatprep.subr.mxu0 0.0
        %592 = vmatpush1.msra.mxu0 %v555
        %593 = vmatprep.subr.mxu0 0.0
        %594 = vmatpush1.msra.mxu0 %v561
        %595 = vmatprep.subr.mxu0 0.0
        %596 = vmatpush1.msra.mxu0 %v563
        %597 = vmatprep.subr.mxu0 0.0
        %598 = vmatpush1.msra.mxu0 0.0
        %599 = vmatprep.subr.mxu0 0.0
        %600 = vmatpush1.msra.mxu0 0.0
        %601 = vmatprep.subr.mxu0 0.0
        %602 = vmatpush1.msra.mxu0 0.0
        %603 = vmatprep.subr.mxu0 0.0
        %604 = vmatpush1.msra.mxu0 0.0
        %605 = vmatprep.subr.mxu0 0.0
        %606 = vmatpush1.msra.mxu0 0.0
        %607 = vmatprep.subr.mxu0 0.0
        %608 = vmatpush1.msra.mxu0 0.0
        %609 = vmatprep.subr.mxu0 0.0
        %610 = vmatpush1.msra.mxu0 0.0
        %611 = vmatprep.subr.mxu0 0.0
        %612 = vmatpush1.msra.mxu0 0.0
        %613 = vmatprep.subr.mxu0 0.0
        %614 = vmatpush1.msra.mxu0 0.0
        %615 = vmatprep.subr.mxu0 0.0
        %616 = vmatpush1.msra.mxu0 0.0
        %617 = vmatprep.subr.mxu0 0.0
        %618 = vmatpush1.msra.mxu0 0.0
        %619 = vmatprep.subr.mxu0 0.0
        %620 = vmatpush1.msra.mxu0 0.0
        %621 = vmatprep.subr.mxu0 0.0
        %622 = vmatpush1.msra.mxu0 0.0
        %623 = vmatprep.subr.mxu0 0.0
        %624 = vmatpush1.msra.mxu0 0.0
        %625 = vmatprep.subr.mxu0 0.0
        %626 = vmatpush1.msra.mxu0 0.0
        %627 = vmatprep.subr.mxu0 0.0
        %628 = vmatpush1.msra.mxu0 0.0
        %629 = vmatprep.subr.mxu0 0.0
        %630 = vmatpush1.msra.mxu0 0.0
        %631 = vmatprep.subr.mxu0 0.0
        %632 = vmatpush1.msra.mxu0 0.0
        %633 = vmatprep.subr.mxu0 0.0
        %634 = vmatpush1.msra.mxu0 0.0
        %635 = vmatprep.subr.mxu0 0.0
        %636 = vmatpush1.msra.mxu0 0.0
        %637 = vmatprep.subr.mxu0 0.0
        %638 = vmatpush1.msra.mxu0 0.0
        %639 = vmatprep.subr.mxu0 0.0
        %640 = vmatpush1.msra.mxu0 0.0
        %641 = vmatprep.subr.mxu0 0.0
        %642 = vmatpush1.msra.mxu0 0.0
        %643 = vmatprep.subr.mxu0 0.0
        %644 = vmatpush1.msra.mxu0 0.0
        %645 = vmatprep.subr.mxu0 0.0
        %646 = vmatpush1.msra.mxu0 0.0
        %647 = vmatprep.subr.mxu0 0.0
        %648 = vmatpush1.msra.mxu0 0.0
        %649 = vmatprep.mubr.f32.mxu0 0.0
        %650 = vmatmul.mubr.f32.gmra.mrb[0].mxu0 %v580
        %v651 = vpop.f32.mrb[0].mxu0
        %v652 = vadd.f32 %v571, %v651
        %v653 = vpop.f32.mrb[0].mxu0
        %654 = vmatprep.mubr.f32.mxu0 0.0
        %655 = vmatmul.mubr.f32.gmra.mrb[0].mxu0 %v583
        %v656 = vpop.f32.mrb[0].mxu0
        %v657 = vadd.f32 %v576, %v656
        %v658 = vpop.f32.mrb[0].mxu0
        %659 = vdwg.mxu0
        %v660 = vmax.f32 %v652, 0.0
        %v661 = vmax.f32 %v657, 0.0
        %v662 = vadd.f32 %v660, %v554
        %v663 = vadd.f32 %v661, %v555
        %664 = vrot.lane.b32.xlu0 %v662, 4
        %v665 = vpop.permute.xlu0 %664
        %666 = vrot.lane.b32.xlu0 %v663, 4
        %v667 = vpop.permute.xlu0 %666
        %668 = vrot.lane.b32.xlu0 %v662, 124
        %v669 = vpop.permute.xlu0 %668
        %670 = vrot.lane.b32.xlu0 %v663, 124
        %v671 = vpop.permute.xlu0 %670
        %v672 = vld [vmem:[#allocation9] sm:$0xff]
        %v673 = vld [vmem:[#allocation9 + $0x8] sm:$0xff]
        %v674 = vld [vmem:[#allocation9 + $0x10] sm:$0xff]
        %v675 = vld [vmem:[#allocation9 + $0x18] sm:$0xff]
        %v676 = vld [vmem:[#allocation9 + $0x20] sm:$0xff]
        %v677 = vld [vmem:[#allocation9 + $0x28] sm:$0xff]
        %v678 = vld [vmem:[#allocation9 + $0x30] sm:$0xff]
        %v679 = vld [vmem:[#allocation9 + $0x38] sm:$0xff]
        %v680 = vld [vmem:[#allocation10] sm:$0xff]
        %v681 = vld [vmem:[#allocation10 + $0x8] sm:$0xff]
        %v682 = vld [vmem:[#allocation10 + $0x10] sm:$0xff]
        %v683 = vld [vmem:[#allocation10 + $0x18] sm:$0xff]
        %v684 = vld [vmem:[#allocation10 + $0x20] sm:$0xff]
        %v685 = vld [vmem:[#allocation10 + $0x28] sm:$0xff]
        %v686 = vld [vmem:[#allocation10 + $0x30] sm:$0xff]
        %v687 = vld [vmem:[#allocation10 + $0x38] sm:$0xff]
        %689 = vset.pattern.permute.xlu0 0
        %690 = vperm.xlu0 %689, %v680
        %v691 = vpop.permute.xlu0 %690
        %694 = vset.pattern.permute.xlu0 0
        %695 = vperm.xlu0 %694, %v681
        %v696 = vpop.permute.xlu0 %695
        %699 = vset.pattern.permute.xlu0 0
        %700 = vperm.xlu0 %699, %v682
        %v701 = vpop.permute.xlu0 %700
        %704 = vset.pattern.permute.xlu0 0
        %705 = vperm.xlu0 %704, %v683
        %v706 = vpop.permute.xlu0 %705
        %709 = vset.pattern.permute.xlu0 0
        %710 = vperm.xlu0 %709, %v684
        %v711 = vpop.permute.xlu0 %710
        %714 = vset.pattern.permute.xlu0 0
        %715 = vperm.xlu0 %714, %v685
        %v716 = vpop.permute.xlu0 %715
        %719 = vset.pattern.permute.xlu0 0
        %720 = vperm.xlu0 %719, %v686
        %v721 = vpop.permute.xlu0 %720
        %724 = vset.pattern.permute.xlu0 0
        %725 = vperm.xlu0 %724, %v687
        %v726 = vpop.permute.xlu0 %725
        %v729 = vsel %vm578, %v672, 0
        %v732 = vsel %vm578, %v673, 0
        %v735 = vsel %vm578, %v674, 0
        %v738 = vsel %vm578, %v675, 0
        %v741 = vsel %vm578, %v676, 0
        %v744 = vsel %vm578, %v677, 0
        %v747 = vsel %vm578, %v678, 0
        %v750 = vsel %vm578, %v679, 0
        %752 = vmatprep.subr.mxu0 0.0
        %753 = vmatpush1.msra.mxu0 %v665
        %754 = vmatprep.subr.mxu0 0.0
        %755 = vmatpush1.msra.mxu0 %v667
        %756 = vmatprep.subr.mxu0 0.0
        %757 = vmatpush1.msra.mxu0 %v662
        %758 = vmatprep.subr.mxu0 0.0
        %759 = vmatpush1.msra.mxu0 %v663
        %760 = vmatprep.subr.mxu0 0.0
        %761 = vmatpush1.msra.mxu0 %v669
        %762 = vmatprep.subr.mxu0 0.0
        %763 = vmatpush1.msra.mxu0 %v671
        %764 = vmatprep.subr.mxu0 0.0
        %765 = vmatpush1.msra.mxu0 0.0
        %766 = vmatprep.subr.mxu0 0.0
        %767 = vmatpush1.msra.mxu0 0.0
        %768 = vmatprep.subr.mxu0 0.0
        %769 = vmatpush1.msra.mxu0 0.0
        %770 = vmatprep.subr.mxu0 0.0
        %771 = vmatpush1.msra.mxu0 0.0
        %772 = vmatprep.subr.mxu0 0.0
        %773 = vmatpush1.msra.mxu0 0.0
        %774 = vmatprep.subr.mxu0 0.0
        %775 = vmatpush1.msra.mxu0 0.0
        %776 = vmatprep.subr.mxu0 0.0
        %777 = vmatpush1.msra.mxu0 0.0
        %778 = vmatprep.subr.mxu0 0.0
        %779 = vmatpush1.msra.mxu0 0.0
        %780 = vmatprep.subr.mxu0 0.0
        %781 = vmatpush1.msra.mxu0 0.0
        %782 = vmatprep.subr.mxu0 0.0
        %783 = vmatpush1.msra.mxu0 0.0
        %784 = vmatprep.subr.mxu0 0.0
        %785 = vmatpush1.msra.mxu0 0.0
        %786 = vmatprep.subr.mxu0 0.0
        %787 = vmatpush1.msra.mxu0 0.0
        %788 = vmatprep.subr.mxu0 0.0
        %789 = vmatpush1.msra.mxu0 0.0
        %790 = vmatprep.subr.mxu0 0.0
        %791 = vmatpush1.msra.mxu0 0.0
        %792 = vmatprep.subr.mxu0 0.0
        %793 = vmatpush1.msra.mxu0 0.0
        %794 = vmatprep.subr.mxu0 0.0
        %795 = vmatpush1.msra.mxu0 0.0
        %796 = vmatprep.subr.mxu0 0.0
        %797 = vmatpush1.msra.mxu0 0.0
        %798 = vmatprep.subr.mxu0 0.0
        %799 = vmatpush1.msra.mxu0 0.0
        %800 = vmatprep.subr.mxu0 0.0
        %801 = vmatpush1.msra.mxu0 0.0
        %802 = vmatprep.subr.mxu0 0.0
        %803 = vmatpush1.msra.mxu0 0.0
        %804 = vmatprep.subr.mxu0 0.0
        %805 = vmatpush1.msra.mxu0 0.0
        %806 = vmatprep.subr.mxu0 0.0
        %807 = vmatpush1.msra.mxu0 0.0
        %808 = vmatprep.subr.mxu0 0.0
        %809 = vmatpush1.msra.mxu0 0.0
        %810 = vmatprep.subr.mxu0 0.0
        %811 = vmatpush1.msra.mxu0 0.0
        %812 = vmatprep.subr.mxu0 0.0
        %813 = vmatpush1.msra.mxu0 0.0
        %814 = vmatprep.subr.mxu0 0.0
        %815 = vmatpush1.msra.mxu0 0.0
        %816 = vmatprep.mubr.f32.mxu0 0.0
        %817 = vmatmul.mubr.f32.gmra.mrb[0].mxu0 %v729
        %v818 = vpop.f32.mrb[0].mxu0
        %v819 = vadd.f32 %v691, %v818
        %v820 = vpop.f32.mrb[0].mxu0
        %821 = vmatprep.mubr.f32.mxu0 0.0
        %822 = vmatmul.mubr.f32.gmra.mrb[0].mxu0 %v732
        %v823 = vpop.f32.mrb[0].mxu0
        %v824 = vadd.f32 %v696, %v823
        %v825 = vpop.f32.mrb[0].mxu0
        %826 = vmatprep.mubr.f32.mxu0 0.0
        %827 = vmatmul.mubr.f32.gmra.mrb[0].mxu0 %v735
        %v828 = vpop.f32.mrb[0].mxu0
        %v829 = vadd.f32 %v701, %v828
        %v830 = vpop.f32.mrb[0].mxu0
        %831 = vmatprep.mubr.f32.mxu0 0.0
        %832 = vmatmul.mubr.f32.gmra.mrb[0].mxu0 %v738
        %v833 = vpop.f32.mrb[0].mxu0
        %v834 = vadd.f32 %v706, %v833
        %v835 = vpop.f32.mrb[0].mxu0
        %836 = vmatprep.mubr.f32.mxu0 0.0
        %837 = vmatmul.mubr.f32.gmra.mrb[0].mxu0 %v741
        %v838 = vpop.f32.mrb[0].mxu0
        %v839 = vadd.f32 %v711, %v838
        %v840 = vpop.f32.mrb[0].mxu0
        %841 = vmatprep.mubr.f32.mxu0 0.0
        %842 = vmatmul.mubr.f32.gmra.mrb[0].mxu0 %v744
        %v843 = vpop.f32.mrb[0].mxu0
        %v844 = vadd.f32 %v716, %v843
        %v845 = vpop.f32.mrb[0].mxu0
        %846 = vmatprep.mubr.f32.mxu0 0.0
        %847 = vmatmul.mubr.f32.gmra.mrb[0].mxu0 %v747
        %v848 = vpop.f32.mrb[0].mxu0
        %v849 = vadd.f32 %v721, %v848
        %v850 = vpop.f32.mrb[0].mxu0
        %851 = vmatprep.mubr.f32.mxu0 0.0
        %852 = vmatmul.mubr.f32.gmra.mrb[0].mxu0 %v750
        %v853 = vpop.f32.mrb[0].mxu0
        %v854 = vadd.f32 %v726, %v853
        %v855 = vpop.f32.mrb[0].mxu0
        %856 = vdwg.mxu0
        %v857 = vmax.f32 %v819, 0.0
        %v858 = vmax.f32 %v824, 0.0
        %v859 = vmax.f32 %v829, 0.0
        %v860 = vmax.f32 %v834, 0.0
        %v861 = vadd.f32 %v857, %v839
        %v862 = vadd.f32 %v858, %v844
        %v863 = vadd.f32 %v859, %v849
        %v864 = vadd.f32 %v860, %v854
        %v865 = vld [vmem:[%s7] sm:$0xf]
        %vm866 = vcmask 261120
        %v868 = vsel %vm866, %v865, 0
        %870 = vmatprep.subr.mxu0 0.0
        %871 = vmatpush1.msra.mxu0 %v861
        %872 = vmatprep.subr.mxu0 0.0
        %873 = vmatpush1.msra.mxu0 %v862
        %874 = vmatprep.subr.mxu0 0.0
        %875 = vmatpush1.msra.mxu0 %v863
        %876 = vmatprep.subr.mxu0 0.0
        %877 = vmatpush1.msra.mxu0 %v864
        %878 = vmatprep.subr.mxu0 0.0
        %879 = vmatpush1.msra.mxu0 0.0
        %880 = vmatprep.subr.mxu0 0.0
        %881 = vmatpush1.msra.mxu0 0.0
        %882 = vmatprep.subr.mxu0 0.0
        %883 = vmatpush1.msra.mxu0 0.0
        %884 = vmatprep.subr.mxu0 0.0
        %885 = vmatpush1.msra.mxu0 0.0
        %886 = vmatprep.subr.mxu0 0.0
        %887 = vmatpush1.msra.mxu0 0.0
        %888 = vmatprep.subr.mxu0 0.0
        %889 = vmatpush1.msra.mxu0 0.0
        %890 = vmatprep.subr.mxu0 0.0
        %891 = vmatpush1.msra.mxu0 0.0
        %892 = vmatprep.subr.mxu0 0.0
        %893 = vmatpush1.msra.mxu0 0.0
        %894 = vmatprep.subr.mxu0 0.0
        %895 = vmatpush1.msra.mxu0 0.0
        %896 = vmatprep.subr.mxu0 0.0
        %897 = vmatpush1.msra.mxu0 0.0
        %898 = vmatprep.subr.mxu0 0.0
        %899 = vmatpush1.msra.mxu0 0.0
        %900 = vmatprep.subr.mxu0 0.0
        %901 = vmatpush1.msra.mxu0 0.0
        %902 = vmatprep.subr.mxu0 0.0
        %903 = vmatpush1.msra.mxu0 0.0
        %904 = vmatprep.subr.mxu0 0.0
        %905 = vmatpush1.msra.mxu0 0.0
        %906 = vmatprep.subr.mxu0 0.0
        %907 = vmatpush1.msra.mxu0 0.0
        %908 = vmatprep.subr.mxu0 0.0
        %909 = vmatpush1.msra.mxu0 0.0
        %910 = vmatprep.subr.mxu0 0.0
        %911 = vmatpush1.msra.mxu0 0.0
        %912 = vmatprep.subr.mxu0 0.0
        %913 = vmatpush1.msra.mxu0 0.0
        %914 = vmatprep.subr.mxu0 0.0
        %915 = vmatpush1.msra.mxu0 0.0
        %916 = vmatprep.subr.mxu0 0.0
        %917 = vmatpush1.msra.mxu0 0.0
        %918 = vmatprep.subr.mxu0 0.0
        %919 = vmatpush1.msra.mxu0 0.0
        %920 = vmatprep.subr.mxu0 0.0
        %921 = vmatpush1.msra.mxu0 0.0
        %922 = vmatprep.subr.mxu0 0.0
        %923 = vmatpush1.msra.mxu0 0.0
        %924 = vmatprep.subr.mxu0 0.0
        %925 = vmatpush1.msra.mxu0 0.0
        %926 = vmatprep.subr.mxu0 0.0
        %927 = vmatpush1.msra.mxu0 0.0
        %928 = vmatprep.subr.mxu0 0.0
        %929 = vmatpush1.msra.mxu0 0.0
        %930 = vmatprep.subr.mxu0 0.0
        %931 = vmatpush1.msra.mxu0 0.0
        %932 = vmatprep.subr.mxu0 0.0
        %933 = vmatpush1.msra.mxu0 0.0
        %934 = vmatprep.mubr.f32.mxu0 0.0
        %935 = vmatmul.mubr.f32.gmra.mrb[0].mxu0 %v868
        %v936 = vpop.f32.mrb[0].mxu0
        %v937 = vadd.f32 0.0, %v936
        %v938 = vpop.f32.mrb[0].mxu0
        %939 = vdwg.mxu0
        %vm940 = vcmask 1043456
        %v941 = vsel %vm940, %v937, 0.0
        %942 = vadd.xlane.f32.xlu0 %v941
        %v943 = vpop.xlane.xlu0 %942
        %v944 = vrcp.pop 128.0
        %v945 = vmul.f32 %v943, %v944
        %v946 = vld [vmem:[%s8] sm:$0xf]
        %v947 = vadd.f32 %v945, %v946
        %vm948 = vcmask 3072
        %949 = vst.msk [vmem:[%s420] sm:$0xf] %vm948, %v947
        %p950 = scmp.lt.s32.totalorder %s26, 1
        %s951 = scalar_select %p950, %s26, 1
        %s952 = smul.addr %s951, 4
        %s953 = scalar_lea.vmem %s9, %s952
        // Predicated region
        $region81: #{fwd.1} parent=55 // pred_check
          %p954 = pneg %p238
        $region82: #{fwd.1} parent=55 // pred_check_branch
          %956 = sbr.rel (%p954) target = $region84
        $region83: #{fwd.1} parent=55 // pred_region
          _
        $region84: #{fwd.1} parent=55 // pred_fallthru
          _
      $region56: #{fwd.1} parent=5 // pred_fallthru
        _
      %p957 = scmp.le.s32.totalorder 2, %s21
      // Predicated region
      $region85: #{fwd.1} parent=5 // pred_check
        %p958 = pneg %p957
      $region86: #{fwd.1} parent=5 // pred_check_branch
        %960 = sbr.rel (%p958) target = $region88
      $region87: #{fwd.1} parent=5 // pred_region
        %s961 = ssub.s32 %s21, 2
        // Predicated region
        $region89: #{fwd.1} parent=87 // pred_check
          %p962 = pneg %p244
        $region90: #{fwd.1} parent=87 // pred_check_branch
          %964 = sbr.rel (%p962) target = $region92
        $region91: #{fwd.1} parent=87 // pred_region
          %p965 = scmp.lt.s32.totalorder %s27, 1
          %s966 = scalar_select %p965, %s27, 1
          %s967 = smul.addr %s966, 4
          %s968 = scalar_lea.vmem %s9, %s967
        $region92: #{fwd.1} parent=87 // pred_fallthru
          _
      $region88: #{fwd.1} parent=5 // pred_fallthru
        _
    $region6: #{fwd.1} parent=1 // loop_footer
      %s25 = sadd.s32 1, %s21
    $region7: #{fwd.1} parent=1 // loop_footer_branch
      %20 = sbr.rel target = $region3
    $region8: #{fwd.1} parent=1 // loop_exit
      _
    %969 = vsyncpa [#allocation3], 1
    %s970 = scalar_lea.sflag [#allocation3], 1
    %971 = vsyncpa %s970, 1
    %972 = vsyncpa [#allocation5], 1
    %973 = vsyncpa [#allocation8], 1
    %974 = vsyncpa [#allocation11], 1

</llo_original>
